<compile_context>
chip_gen: v6e
topology: v6e:2x2x1
jax: 0.10.0
libtpu: 0.0.40
codegen_flags: <defaults>
</compile_context>

<pallas_src>
import functools

import jax
import jax.numpy as jnp
from jax.experimental import pallas as pl
from jax.experimental.pallas import tpu as pltpu

F_PAD_LANES = 128  # pad num_filter up to a multiple of this for lane-dense stores


def _round_up(x, m):
    return ((x + m - 1) // m) * m


def _pick_batch_block(n, target=32):
    """Largest divisor of n that is <= target and sublane-friendly (mult of 8),
    falling back to the whole batch (single grid step) if none exists."""
    if n <= target:
        return n
    for nb in range(min(n, target), 0, -1):
        if n % nb == 0 and nb % 8 == 0:
            return nb
    return n


def cnn_kernel(xcol_ref, w_ref, b_ref, o_ref):
    # xcol_ref: (NB*L_out, K*C)   one batch-block of im2col'd activations
    # w_ref:    (K*C, Fp)         reshaped + lane-padded conv weight
    # b_ref:    (1, Fp)           lane-padded bias
    # o_ref:    (NB, Fp)          max-pooled output block
    nb = o_ref.shape[0]
    rows = xcol_ref.shape[0]
    l_out = rows // nb
    fp = w_ref.shape[1]

    # One MXU matmul; operands stay in their native dtype (bf16 path is native),
    # accumulation in f32.
    acc = jnp.dot(xcol_ref[...], w_ref[...],
                  preferred_element_type=jnp.float32)            # (NB*L_out, Fp)
    acc = jnp.maximum(acc + b_ref[...].astype(jnp.float32), 0.0)  # bias + ReLU, f32

    # Only now reshape to 3-D for the max-over-time reduce.
    acc = acc.reshape(nb, l_out, fp)
    o_ref[...] = jnp.max(acc, axis=1).astype(o_ref.dtype)


def prepare_conv_params(weight_fck, bias_f):
    """One-time parameter prep (hoist out of the forward path):
    (F, C, K) PyTorch weight -> (K*C, F_pad) matmul weight, bias -> (1, F_pad)."""
    fo, c, k = weight_fck.shape
    fp = _round_up(fo, F_PAD_LANES)
    w2d = jnp.transpose(weight_fck, (2, 1, 0)).reshape(k * c, fo)  # (K*C, F)
    w2d = jnp.pad(w2d, ((0, 0), (0, fp - fo)))
    b2d = jnp.pad(bias_f, (0, fp - fo)).reshape(1, fp)
    return w2d, b2d


@functools.partial(jax.jit, static_argnames=("kernel_size", "num_filter"))
def cnn_forward(x_ncl, w2d, b2d, *, kernel_size, num_filter):
    """x_ncl: (N, C_in, L) like PyTorch; returns (N, num_filter)."""
    n, c, l = x_ncl.shape
    k = kernel_size
    l_out = l - k + 1
    assert l_out >= 1, "max_length must be >= kernel_size"
    kc, fp = w2d.shape
    assert kc == k * c

    # im2col (XLA, outside the kernel): NCL -> NLC -> (N*L_out, K*C).
    # TODO(synk): at production sizes accept NLC directly from the producer so
    # this transpose does not add an extra HBM round trip.
    x_nlc = jnp.transpose(x_ncl, (0, 2, 1))                       # (N, L, C)
    xcol = jnp.concatenate(
        [x_nlc[:, kk:kk + l_out, :] for kk in range(k)], axis=-1)  # (N, L_out, K*C)
    xcol = xcol.reshape(n * l_out, k * c)                          # (N*L_out, K*C)

    nb = _pick_batch_block(n)
    grid = (n // nb,)
    rows_per_block = nb * l_out

    itemsize = jnp.dtype(x_ncl.dtype).itemsize
    cost = pl.CostEstimate(
        flops=2 * n * l_out * k * c * fp,
        transcendentals=0,
        bytes_accessed=(n * l_out * k * c * itemsize      # X_col
                        + k * c * fp * itemsize           # weight
                        + fp * 4                          # bias
                        + n * fp * itemsize),             # output
    )

    out = pl.pallas_call(
        cnn_kernel,
        out_shape=jax.ShapeDtypeStruct((n, fp), x_ncl.dtype),
        grid_spec=pltpu.PrefetchScalarGridSpec(
            num_scalar_prefetch=0,
            grid=grid,
            in_specs=[
                pl.BlockSpec((rows_per_block, k * c), lambda i: (i, 0)),
                pl.BlockSpec((k * c, fp), lambda i: (0, 0)),
                pl.BlockSpec((1, fp), lambda i: (0, 0)),
            ],
            out_specs=pl.BlockSpec((nb, fp), lambda i: (i, 0)),
        ),
        compiler_params=pltpu.CompilerParams(
            dimension_semantics=("parallel",)),
        cost_estimate=cost,
    )(xcol, w2d, b2d)

    return out[:, :num_filter]


def reference_forward(x_ncl, weight_fck, bias_f):
    """Pure-JAX reference with identical semantics (validation only)."""
    n, c, l = x_ncl.shape
    fo, _, k = weight_fck.shape
    l_out = l - k + 1
    acc = jnp.zeros((n, fo, l_out), jnp.float32)
    for kk in range(k):
        xs = x_ncl[:, :, kk:kk + l_out].astype(jnp.float32)   # (N, C, L_out)
        wk = weight_fck[:, :, kk].astype(jnp.float32)          # (F, C)
        acc = acc + jnp.einsum('ncl,fc->nfl', xs, wk)
    acc = acc + bias_f.astype(jnp.float32)[None, :, None]
    acc = jnp.maximum(acc, 0.0)
    return jnp.max(acc, axis=-1).astype(x_ncl.dtype)


if __name__ == "__main__":
    # Hyperparameters (defaults of the PyTorch module), small shapes.
    embed_size = 50
    kernel_size = 5
    max_length = 21
    num_filter = 16
    batch = 4

    key = jax.random.PRNGKey(0)
    kx, kw, kb = jax.random.split(key, 3)

    # Deterministic init mimicking PyTorch Conv1d uniform(-s, s), s = 1/sqrt(C*K).
    s = 1.0 / jnp.sqrt(jnp.float32(embed_size * kernel_size))
    weight = jax.random.uniform(
        kw, (num_filter, embed_size, kernel_size), jnp.float32, -s, s)
    bias = jax.random.uniform(kb, (num_filter,), jnp.float32, -s, s)

    # Input: (batch, embed_size, max_length), PyTorch NCL layout.
    x = jax.random.normal(kx, (batch, embed_size, max_length), jnp.float32)

    # One-time parameter prep (hoisted out of the forward path).
    w2d, b2d = prepare_conv_params(weight, bias)

    out = jax.block_until_ready(
        cnn_forward(x, w2d, b2d, kernel_size=kernel_size, num_filter=num_filter))
    ref = jax.block_until_ready(reference_forward(x, weight, bias))

    assert out.shape == (batch, num_filter), out.shape
    assert jnp.allclose(out, ref, atol=1e-5, rtol=1e-5), "mismatch vs reference"

    print("KERNEL_OK")
</pallas_src>

<mosaic_0001>
module attributes {stable_mosaic.version = 11 : i64} {
  func.func @cnn_kernel(%arg0: i32, %arg1: memref<68x250xf32, #tpu.memory_space<vmem>>, %arg2: memref<250x128xf32, #tpu.memory_space<vmem>>, %arg3: memref<1x128xf32, #tpu.memory_space<vmem>>, %arg4: memref<4x128xf32, #tpu.memory_space<vmem>>) attributes {dimension_semantics = [#tpu.dimension_semantics<parallel>], iteration_bounds = array<i64: 1>, scalar_prefetch = 0 : i64, scratch_operands = 0 : i64, tpu.core_type = #tpu.core_type<tc>, window_params = [{transform_indices = @transform_0, window_bounds = array<i64: 68, 250>}, {pipeline_mode = #tpu.pipeline_mode<synchronous>, transform_indices = @transform_1, window_bounds = array<i64: 250, 128>}, {pipeline_mode = #tpu.pipeline_mode<synchronous>, transform_indices = @transform_2, window_bounds = array<i64: 1, 128>}, {transform_indices = @transform_3, window_bounds = array<i64: 4, 128>}]} {
    %c0 = arith.constant 0 : index
    %c0_0 = arith.constant 0 : index
    %0 = vector.load %arg1[%c0, %c0_0] : memref<68x250xf32, #tpu.memory_space<vmem>>, vector<68x250xf32>
    %c0_1 = arith.constant 0 : index
    %c0_2 = arith.constant 0 : index
    %1 = vector.load %arg2[%c0_1, %c0_2] : memref<250x128xf32, #tpu.memory_space<vmem>>, vector<250x128xf32>
    %cst = arith.constant dense<0.000000e+00> : vector<68x128xf32>
    %2 = tpu.matmul %0, %1, %cst {dimension_numbers = #tpu.dot_dimension_numbers<[1], [0], [0], [1], [0, 0, 1, 1], [], []>} : vector<68x250xf32>, vector<250x128xf32>, vector<68x128xf32> -> vector<68x128xf32>
    %c0_3 = arith.constant 0 : index
    %c0_4 = arith.constant 0 : index
    %3 = vector.load %arg3[%c0_3, %c0_4] : memref<1x128xf32, #tpu.memory_space<vmem>>, vector<1x128xf32>
    %4 = vector.broadcast %3 : vector<1x128xf32> to vector<68x128xf32>
    %5 = arith.addf %2, %4 : vector<68x128xf32>
    %cst_5 = arith.constant 0.000000e+00 : f32
    %6 = vector.broadcast %cst_5 : f32 to vector<68x128xf32>
    %7 = arith.maximumf %5, %6 : vector<68x128xf32>
    %8 = vector.shape_cast %7 : vector<68x128xf32> to vector<4x17x128xf32>
    %cst_6 = arith.constant dense<0xFF800000> : vector<4x128xf32>
    %9 = vector.multi_reduction <maximumf>, %8, %cst_6 [1] : vector<4x17x128xf32> to vector<4x128xf32>
    %c0_7 = arith.constant 0 : index
    %c0_8 = arith.constant 0 : index
    %10 = vector.load %arg4[%c0_7, %c0_8] : memref<4x128xf32, #tpu.memory_space<vmem>>, vector<4x128xf32>
    tpu.vector_store %arg4[%c0_7, %c0_8], %9 {strides = array<i32>} : memref<4x128xf32, #tpu.memory_space<vmem>>, vector<4x128xf32>,
    return
  }
  func.func @transform_0(%arg0: i32) -> (i32, i32) {
    %c0_i32 = arith.constant 0 : i32
    %c0_i32_0 = arith.constant 0 : i32
    return %arg0, %c0_i32 : i32, i32
  }
  func.func @transform_1(%arg0: i32) -> (i32, i32) {
    %c0_i32 = arith.constant 0 : i32
    %c0_i32_0 = arith.constant 0 : i32
    %c0_i32_1 = arith.constant 0 : i32
    return %c0_i32, %c0_i32_0 : i32, i32
  }
  func.func @transform_2(%arg0: i32) -> (i32, i32) {
    %c0_i32 = arith.constant 0 : i32
    %c0_i32_0 = arith.constant 0 : i32
    %c0_i32_1 = arith.constant 0 : i32
    return %c0_i32, %c0_i32_0 : i32, i32
  }
  func.func @transform_3(%arg0: i32) -> (i32, i32) {
    %c0_i32 = arith.constant 0 : i32
    %c0_i32_0 = arith.constant 0 : i32
    return %arg0, %c0_i32 : i32, i32
  }
}

</mosaic_0001>

<llo_original>
// kernel: cnn_forward.1
$region0: #{cnn_forward.1}
  #allocation0 [shape = 'u32[]', space=smem, size = 0x4, offset = 0x4, fixed_abs, tag = 'smem constant byte address 0x4 - core index']
  #allocation1 [shape = 'u32[144,128]{1,0:T(1,128)}', space=vmem, size = 0x12000, scoped, tag = 'internal scratch']
  %s0 = inlined_call_operand.vmem [shape: f32[68,250], index: 0, kind: input, shape index: {}]
  %s1 = inlined_call_operand.vmem [shape: f32[250,128], index: 1, kind: input, shape index: {}]
  %s2 = inlined_call_operand.vmem [shape: f32[1,128], index: 2, kind: input, shape index: {}]
  %s3 = inlined_call_operand.hbm [shape: f32[4,128], index: 3, kind: output, shape index: {}]
  %s4 = sld [smem:[#allocation0]]
  $region22: #{cnn_forward.1} parent=0
    _
  %s6 = ssub.s32 1, %s4
  %s7 = scalar_select 0, %s6, %s4
  $region1: #{cnn_forward.1} parent=0
    #allocation2 [shape = 'u8[2048]{0}', space=vmem, size = 0x800, scoped, tag = 'output window, operand 0, single buffered']
    #allocation3 [shape = 's32[1]{0}', space=sflag, size = 0x4, scoped, tag = 'scoped memory for cnn_forward.1']
    %8 = vsyncpa [#allocation3], 0
    // Predicated region
    $region2: #{cnn_forward.1} parent=1 // pred_check
      _
    $region3: #{cnn_forward.1} parent=1 // pred_check_branch
      %10 = sbr.rel (0) target = $region5
    $region4: #{cnn_forward.1} parent=1 // pred_region
      _
    $region5: #{cnn_forward.1} parent=1 // pred_fallthru
      _
    // Predicated region
    $region6: #{cnn_forward.1} parent=1 // pred_check
      _
    $region7: #{cnn_forward.1} parent=1 // pred_check_branch
      %12 = sbr.rel (0) target = $region9
    $region8: #{cnn_forward.1} parent=1 // pred_region
      _
    $region9: #{cnn_forward.1} parent=1 // pred_fallthru
      _
    // Predicated region
    $region10: #{cnn_forward.1} parent=1 // pred_check
      _
    $region11: #{cnn_forward.1} parent=1 // pred_check_branch
      %14 = sbr.rel (0) target = $region13
    $region12: #{cnn_forward.1} parent=1 // pred_region
      _
    $region13: #{cnn_forward.1} parent=1 // pred_fallthru
      _
    %v15 = vld [vmem:[%s0] sm:$0xff]
    %v16 = vld [vmem:[%s0 + $0x8] sm:$0xff]
    %v17 = vld [vmem:[%s0 + $0x10] sm:$0xff]
    %v18 = vld [vmem:[%s0 + $0x18] sm:$0xff]
    %v19 = vld [vmem:[%s0 + $0x20] sm:$0xff]
    %v20 = vld [vmem:[%s0 + $0x28] sm:$0xff]
    %v21 = vld [vmem:[%s0 + $0x30] sm:$0xff]
    %v22 = vld [vmem:[%s0 + $0x38] sm:$0xff]
    %v23 = vld [vmem:[%s0 + $0x40] sm:$0xff]
    %v24 = vld [vmem:[%s0 + $0x48] sm:$0xff]
    %v25 = vld [vmem:[%s0 + $0x50] sm:$0xff]
    %v26 = vld [vmem:[%s0 + $0x58] sm:$0xff]
    %v27 = vld [vmem:[%s0 + $0x60] sm:$0xff]
    %v28 = vld [vmem:[%s0 + $0x68] sm:$0xff]
    %v29 = vld [vmem:[%s0 + $0x70] sm:$0xff]
    %v30 = vld [vmem:[%s0 + $0x78] sm:$0xff]
    %v31 = vld [vmem:[%s0 + $0x80] sm:$0xf]
    %v32 = vld [vmem:[%s0 + $0x88] sm:$0xf]
    %v33 = vld [vmem:[%s1] sm:$0xff]
    %v34 = vld [vmem:[%s1 + $0x8] sm:$0xff]
    %v35 = vld [vmem:[%s1 + $0x10] sm:$0xff]
    %v36 = vld [vmem:[%s1 + $0x18] sm:$0xff]
    %v37 = vld [vmem:[%s1 + $0x20] sm:$0xff]
    %v38 = vld [vmem:[%s1 + $0x28] sm:$0xff]
    %v39 = vld [vmem:[%s1 + $0x30] sm:$0xff]
    %v40 = vld [vmem:[%s1 + $0x38] sm:$0xff]
    %v41 = vld [vmem:[%s1 + $0x40] sm:$0xff]
    %v42 = vld [vmem:[%s1 + $0x48] sm:$0xff]
    %v43 = vld [vmem:[%s1 + $0x50] sm:$0xff]
    %v44 = vld [vmem:[%s1 + $0x58] sm:$0xff]
    %v45 = vld [vmem:[%s1 + $0x60] sm:$0xff]
    %v46 = vld [vmem:[%s1 + $0x68] sm:$0xff]
    %v47 = vld [vmem:[%s1 + $0x70] sm:$0xff]
    %v48 = vld [vmem:[%s1 + $0x78] sm:$0xff]
    %v49 = vld [vmem:[%s1 + $0x80] sm:$0xff]
    %v50 = vld [vmem:[%s1 + $0x88] sm:$0xff]
    %v51 = vld [vmem:[%s1 + $0x90] sm:$0xff]
    %v52 = vld [vmem:[%s1 + $0x98] sm:$0xff]
    %v53 = vld [vmem:[%s1 + $0xa0] sm:$0xff]
    %v54 = vld [vmem:[%s1 + $0xa8] sm:$0xff]
    %v55 = vld [vmem:[%s1 + $0xb0] sm:$0xff]
    %v56 = vld [vmem:[%s1 + $0xb8] sm:$0xff]
    %v57 = vld [vmem:[%s1 + $0xc0] sm:$0xff]
    %v58 = vld [vmem:[%s1 + $0xc8] sm:$0xff]
    %v59 = vld [vmem:[%s1 + $0xd0] sm:$0xff]
    %v60 = vld [vmem:[%s1 + $0xd8] sm:$0xff]
    %v61 = vld [vmem:[%s1 + $0xe0] sm:$0xff]
    %v62 = vld [vmem:[%s1 + $0xe8] sm:$0xff]
    %v63 = vld [vmem:[%s1 + $0xf0] sm:$0xff]
    %v64 = vld [vmem:[%s1 + $0xf8] sm:$0x3]
    %v65 = vld [vmem:[%s2] sm:$0x1]
    %v67 = vlaneseq
    %v68 = vshrl.u32 %v67, 7
    %v69 = vsub.s32 0, %v68
    %v70 = vrot.slane %v65, %v69
    %vm72 = vcmask 998400
    %v74 = vsel %vm72, %v16, 0
    %v77 = vsel %vm72, %v18, 0
    %v80 = vsel %vm72, %v20, 0
    %v83 = vsel %vm72, %v22, 0
    %v86 = vsel %vm72, %v24, 0
    %v89 = vsel %vm72, %v26, 0
    %v92 = vsel %vm72, %v28, 0
    %v95 = vsel %vm72, %v30, 0
    %v98 = vsel %vm72, %v32, 0
    %vm100 = vcmask 1041408
    %v102 = vsel %vm100, %v64, 0
    %104 = vmatprep.subr.mxu0 0.0
    %105 = vmatpush1.msra.mxu0 %v48
    %106 = vmatprep.subr.mxu0 0.0
    %107 = vmatpush1.msra.mxu0 %v47
    %108 = vmatprep.subr.mxu0 0.0
    %109 = vmatpush1.msra.mxu0 %v46
    %110 = vmatprep.subr.mxu0 0.0
    %111 = vmatpush1.msra.mxu0 %v45
    %112 = vmatprep.subr.mxu0 0.0
    %113 = vmatpush1.msra.mxu0 %v44
    %114 = vmatprep.subr.mxu0 0.0
    %115 = vmatpush1.msra.mxu0 %v43
    %116 = vmatprep.subr.mxu0 0.0
    %117 = vmatpush1.msra.mxu0 %v42
    %118 = vmatprep.subr.mxu0 0.0
    %119 = vmatpush1.msra.mxu0 %v41
    %120 = vmatprep.subr.mxu0 0.0
    %121 = vmatpush1.msra.mxu0 %v40
    %122 = vmatprep.subr.mxu0 0.0
    %123 = vmatpush1.msra.mxu0 %v39
    %124 = vmatprep.subr.mxu0 0.0
    %125 = vmatpush1.msra.mxu0 %v38
    %126 = vmatprep.subr.mxu0 0.0
    %127 = vmatpush1.msra.mxu0 %v37
    %128 = vmatprep.subr.mxu0 0.0
    %129 = vmatpush1.msra.mxu0 %v36
    %130 = vmatprep.subr.mxu0 0.0
    %131 = vmatpush1.msra.mxu0 %v35
    %132 = vmatprep.subr.mxu0 0.0
    %133 = vmatpush1.msra.mxu0 %v34
    %134 = vmatprep.subr.mxu0 0.0
    %135 = vmatpush1.msra.mxu0 %v33
    %136 = vmatprep.subr.mxu0 0.0
    %137 = vmatpush2.msra.mxu0 %v102
    %138 = vmatprep.subr.mxu0 0.0
    %139 = vmatpush2.msra.mxu0 %v63
    %140 = vmatprep.subr.mxu0 0.0
    %141 = vmatpush2.msra.mxu0 %v62
    %142 = vmatprep.subr.mxu0 0.0
    %143 = vmatpush2.msra.mxu0 %v61
    %144 = vmatprep.subr.mxu0 0.0
    %145 = vmatpush2.msra.mxu0 %v60
    %146 = vmatprep.subr.mxu0 0.0
    %147 = vmatpush2.msra.mxu0 %v59
    %148 = vmatprep.subr.mxu0 0.0
    %149 = vmatpush2.msra.mxu0 %v58
    %150 = vmatprep.subr.mxu0 0.0
    %151 = vmatpush2.msra.mxu0 %v57
    %152 = vmatprep.subr.mxu0 0.0
    %153 = vmatpush2.msra.mxu0 %v56
    %154 = vmatprep.subr.mxu0 0.0
    %155 = vmatpush2.msra.mxu0 %v55
    %156 = vmatprep.subr.mxu0 0.0
    %157 = vmatpush2.msra.mxu0 %v54
    %158 = vmatprep.subr.mxu0 0.0
    %159 = vmatpush2.msra.mxu0 %v53
    %160 = vmatprep.subr.mxu0 0.0
    %161 = vmatpush2.msra.mxu0 %v52
    %162 = vmatprep.subr.mxu0 0.0
    %163 = vmatpush2.msra.mxu0 %v51
    %164 = vmatprep.subr.mxu0 0.0
    %165 = vmatpush2.msra.mxu0 %v50
    %166 = vmatprep.subr.mxu0 0.0
    %167 = vmatpush2.msra.mxu0 %v49
    %168 = vmatprep.mubr.f32.mxu0 %v74
    %169 = vmatmul.mubr.f32.gmra.mxu0 %v15
    %v170 = vpop.f32.mrf.mxu0
    %v171 = vadd.f32 %v70, %v170
    %v172 = vpop.f32.mrf.mxu0
    %173 = vmatprep.mubr.f32.mxu0 %v77
    %174 = vmatmul.mubr.f32.gmra.mxu0 %v17
    %v175 = vpop.f32.mrf.mxu0
    %v176 = vadd.f32 %v70, %v175
    %v177 = vpop.f32.mrf.mxu0
    %178 = vmatprep.mubr.f32.mxu0 %v80
    %179 = vmatmul.mubr.f32.gmra.mxu0 %v19
    %v180 = vpop.f32.mrf.mxu0
    %v181 = vadd.f32 %v70, %v180
    %v182 = vpop.f32.mrf.mxu0
    %183 = vmatprep.mubr.f32.mxu0 %v83
    %184 = vmatmul.mubr.f32.gmra.mxu0 %v21
    %v185 = vpop.f32.mrf.mxu0
    %v186 = vadd.f32 %v70, %v185
    %v187 = vpop.f32.mrf.mxu0
    %188 = vmatprep.mubr.f32.mxu0 %v86
    %189 = vmatmul.mubr.f32.gmra.mxu0 %v23
    %v190 = vpop.f32.mrf.mxu0
    %v191 = vadd.f32 %v70, %v190
    %v192 = vpop.f32.mrf.mxu0
    %193 = vmatprep.mubr.f32.mxu0 %v89
    %194 = vmatmul.mubr.f32.gmra.mxu0 %v25
    %v195 = vpop.f32.mrf.mxu0
    %v196 = vadd.f32 %v70, %v195
    %v197 = vpop.f32.mrf.mxu0
    %198 = vmatprep.mubr.f32.mxu0 %v92
    %199 = vmatmul.mubr.f32.gmra.mxu0 %v27
    %v200 = vpop.f32.mrf.mxu0
    %v201 = vadd.f32 %v70, %v200
    %v202 = vpop.f32.mrf.mxu0
    %203 = vmatprep.mubr.f32.mxu0 %v95
    %204 = vmatmul.mubr.f32.gmra.mxu0 %v29
    %v205 = vpop.f32.mrf.mxu0
    %v206 = vadd.f32 %v70, %v205
    %v207 = vpop.f32.mrf.mxu0
    %208 = vmatprep.mubr.f32.mxu0 %v98
    %209 = vmatmul.mubr.f32.gmra.mxu0 %v31
    %v210 = vpop.f32.mrf.mxu0
    %v211 = vadd.f32 %v70, %v210
    %v212 = vpop.f32.mrf.mxu0
    %213 = vdwg.mxu0
    %v214 = vmax.f32 %v171, 0.0
    %v215 = vmax.f32 %v176, 0.0
    %v216 = vmax.f32 %v181, 0.0
    %v217 = vmax.f32 %v186, 0.0
    %v218 = vmax.f32 %v191, 0.0
    %v219 = vmax.f32 %v196, 0.0
    %v220 = vmax.f32 %v201, 0.0
    %v221 = vmax.f32 %v206, 0.0
    %v222 = vmax.f32 %v211, 0.0
    %v232 = vcombine.high %v214, %v214
    %v234 = vunpack.c.l.s4 1966171168
    %v235 = vunpack.c.0.s8 %v234
    %v236 = vlaneseq
    %v237 = vshrl.u32 %v236, 7
    %v238 = vsub.s32 %v235, %v237
    %v239 = vrot.slane %v214, %v238
    %v241 = vunpack.c.l.s4 1966171168
    %v242 = vunpack.c.0.s8 %v241
    %v243 = vlaneseq
    %v244 = vshrl.u32 %v243, 7
    %v245 = vsub.s32 %v242, %v244
    %v246 = vrot.slane %v232, %v245
    %v247 = vcombine.high %v239, %v239
    %v248 = vcombine.high %v246, %v246
    %v250 = vunpack.c.l.s4 1966171168
    %v251 = vunpack.c.0.s8 %v250
    %v252 = vlaneseq
    %v253 = vshrl.u32 %v252, 7
    %v254 = vsub.s32 %v251, %v253
    %v255 = vrot.slane %v239, %v254
    %v257 = vunpack.c.l.s4 1966171168
    %v258 = vunpack.c.0.s8 %v257
    %v259 = vlaneseq
    %v260 = vshrl.u32 %v259, 7
    %v261 = vsub.s32 %v258, %v260
    %v262 = vrot.slane %v246, %v261
    %v264 = vunpack.c.l.s4 1966171168
    %v265 = vunpack.c.0.s8 %v264
    %v266 = vlaneseq
    %v267 = vshrl.u32 %v266, 7
    %v268 = vsub.s32 %v265, %v267
    %v269 = vrot.slane %v247, %v268
    %v271 = vunpack.c.l.s4 1966171168
    %v272 = vunpack.c.0.s8 %v271
    %v273 = vlaneseq
    %v274 = vshrl.u32 %v273, 7
    %v275 = vsub.s32 %v272, %v274
    %v276 = vrot.slane %v248, %v275
    %v277 = vcombine.high %v255, %v255
    %v278 = vcombine.high %v262, %v262
    %v279 = vcombine.high %v269, %v269
    %v280 = vcombine.high %v276, %v276
    %v281 = vcombine.high %v215, %v215
    %v283 = vunpack.c.l.s4 1966171168
    %v284 = vunpack.c.0.s8 %v283
    %v285 = vlaneseq
    %v286 = vshrl.u32 %v285, 7
    %v287 = vsub.s32 %v284, %v286
    %v288 = vrot.slane %v215, %v287
    %v290 = vunpack.c.l.s4 1966171168
    %v291 = vunpack.c.0.s8 %v290
    %v292 = vlaneseq
    %v293 = vshrl.u32 %v292, 7
    %v294 = vsub.s32 %v291, %v293
    %v295 = vrot.slane %v281, %v294
    %v296 = vcombine.high %v288, %v288
    %v297 = vcombine.high %v295, %v295
    %v299 = vunpack.c.l.s4 1966171168
    %v300 = vunpack.c.0.s8 %v299
    %v301 = vlaneseq
    %v302 = vshrl.u32 %v301, 7
    %v303 = vsub.s32 %v300, %v302
    %v304 = vrot.slane %v288, %v303
    %v306 = vunpack.c.l.s4 1966171168
    %v307 = vunpack.c.0.s8 %v306
    %v308 = vlaneseq
    %v309 = vshrl.u32 %v308, 7
    %v310 = vsub.s32 %v307, %v309
    %v311 = vrot.slane %v295, %v310
    %v313 = vunpack.c.l.s4 1966171168
    %v314 = vunpack.c.0.s8 %v313
    %v315 = vlaneseq
    %v316 = vshrl.u32 %v315, 7
    %v317 = vsub.s32 %v314, %v316
    %v318 = vrot.slane %v296, %v317
    %v320 = vunpack.c.l.s4 1966171168
    %v321 = vunpack.c.0.s8 %v320
    %v322 = vlaneseq
    %v323 = vshrl.u32 %v322, 7
    %v324 = vsub.s32 %v321, %v323
    %v325 = vrot.slane %v297, %v324
    %v326 = vcombine.high %v304, %v304
    %v327 = vcombine.high %v311, %v311
    %v328 = vcombine.high %v318, %v318
    %v329 = vcombine.high %v325, %v325
    %v330 = vcombine.high %v216, %v216
    %v332 = vunpack.c.l.s4 1966171168
    %v333 = vunpack.c.0.s8 %v332
    %v334 = vlaneseq
    %v335 = vshrl.u32 %v334, 7
    %v336 = vsub.s32 %v333, %v335
    %v337 = vrot.slane %v216, %v336
    %v339 = vunpack.c.l.s4 1966171168
    %v340 = vunpack.c.0.s8 %v339
    %v341 = vlaneseq
    %v342 = vshrl.u32 %v341, 7
    %v343 = vsub.s32 %v340, %v342
    %v344 = vrot.slane %v330, %v343
    %v345 = vcombine.high %v337, %v337
    %v346 = vcombine.high %v344, %v344
    %v348 = vunpack.c.l.s4 1966171168
    %v349 = vunpack.c.0.s8 %v348
    %v350 = vlaneseq
    %v351 = vshrl.u32 %v350, 7
    %v352 = vsub.s32 %v349, %v351
    %v353 = vrot.slane %v337, %v352
    %v355 = vunpack.c.l.s4 1966171168
    %v356 = vunpack.c.0.s8 %v355
    %v357 = vlaneseq
    %v358 = vshrl.u32 %v357, 7
    %v359 = vsub.s32 %v356, %v358
    %v360 = vrot.slane %v344, %v359
    %v362 = vunpack.c.l.s4 1966171168
    %v363 = vunpack.c.0.s8 %v362
    %v364 = vlaneseq
    %v365 = vshrl.u32 %v364, 7
    %v366 = vsub.s32 %v363, %v365
    %v367 = vrot.slane %v345, %v366
    %v369 = vunpack.c.l.s4 1966171168
    %v370 = vunpack.c.0.s8 %v369
    %v371 = vlaneseq
    %v372 = vshrl.u32 %v371, 7
    %v373 = vsub.s32 %v370, %v372
    %v374 = vrot.slane %v346, %v373
    %v375 = vcombine.high %v353, %v353
    %v376 = vcombine.high %v360, %v360
    %v377 = vcombine.high %v367, %v367
    %v378 = vcombine.high %v374, %v374
    %v379 = vcombine.high %v217, %v217
    %v381 = vunpack.c.l.s4 1966171168
    %v382 = vunpack.c.0.s8 %v381
    %v383 = vlaneseq
    %v384 = vshrl.u32 %v383, 7
    %v385 = vsub.s32 %v382, %v384
    %v386 = vrot.slane %v217, %v385
    %v388 = vunpack.c.l.s4 1966171168
    %v389 = vunpack.c.0.s8 %v388
    %v390 = vlaneseq
    %v391 = vshrl.u32 %v390, 7
    %v392 = vsub.s32 %v389, %v391
    %v393 = vrot.slane %v379, %v392
    %v394 = vcombine.high %v386, %v386
    %v395 = vcombine.high %v393, %v393
    %v397 = vunpack.c.l.s4 1966171168
    %v398 = vunpack.c.0.s8 %v397
    %v399 = vlaneseq
    %v400 = vshrl.u32 %v399, 7
    %v401 = vsub.s32 %v398, %v400
    %v402 = vrot.slane %v386, %v401
    %v404 = vunpack.c.l.s4 1966171168
    %v405 = vunpack.c.0.s8 %v404
    %v406 = vlaneseq
    %v407 = vshrl.u32 %v406, 7
    %v408 = vsub.s32 %v405, %v407
    %v409 = vrot.slane %v393, %v408
    %v411 = vunpack.c.l.s4 1966171168
    %v412 = vunpack.c.0.s8 %v411
    %v413 = vlaneseq
    %v414 = vshrl.u32 %v413, 7
    %v415 = vsub.s32 %v412, %v414
    %v416 = vrot.slane %v394, %v415
    %v418 = vunpack.c.l.s4 1966171168
    %v419 = vunpack.c.0.s8 %v418
    %v420 = vlaneseq
    %v421 = vshrl.u32 %v420, 7
    %v422 = vsub.s32 %v419, %v421
    %v423 = vrot.slane %v395, %v422
    %v424 = vcombine.high %v402, %v402
    %v425 = vcombine.high %v409, %v409
    %v426 = vcombine.high %v416, %v416
    %v427 = vcombine.high %v423, %v423
    %v428 = vcombine.high %v218, %v218
    %v430 = vunpack.c.l.s4 1966171168
    %v431 = vunpack.c.0.s8 %v430
    %v432 = vlaneseq
    %v433 = vshrl.u32 %v432, 7
    %v434 = vsub.s32 %v431, %v433
    %v435 = vrot.slane %v218, %v434
    %v437 = vunpack.c.l.s4 1966171168
    %v438 = vunpack.c.0.s8 %v437
    %v439 = vlaneseq
    %v440 = vshrl.u32 %v439, 7
    %v441 = vsub.s32 %v438, %v440
    %v442 = vrot.slane %v428, %v441
    %v443 = vcombine.high %v435, %v435
    %v444 = vcombine.high %v442, %v442
    %v446 = vunpack.c.l.s4 1966171168
    %v447 = vunpack.c.0.s8 %v446
    %v448 = vlaneseq
    %v449 = vshrl.u32 %v448, 7
    %v450 = vsub.s32 %v447, %v449
    %v451 = vrot.slane %v435, %v450
    %v453 = vunpack.c.l.s4 1966171168
    %v454 = vunpack.c.0.s8 %v453
    %v455 = vlaneseq
    %v456 = vshrl.u32 %v455, 7
    %v457 = vsub.s32 %v454, %v456
    %v458 = vrot.slane %v442, %v457
    %v460 = vunpack.c.l.s4 1966171168
    %v461 = vunpack.c.0.s8 %v460
    %v462 = vlaneseq
    %v463 = vshrl.u32 %v462, 7
    %v464 = vsub.s32 %v461, %v463
    %v465 = vrot.slane %v443, %v464
    %v467 = vunpack.c.l.s4 1966171168
    %v468 = vunpack.c.0.s8 %v467
    %v469 = vlaneseq
    %v470 = vshrl.u32 %v469, 7
    %v471 = vsub.s32 %v468, %v470
    %v472 = vrot.slane %v444, %v471
    %v473 = vcombine.high %v451, %v451
    %v474 = vcombine.high %v458, %v458
    %v475 = vcombine.high %v465, %v465
    %v476 = vcombine.high %v472, %v472
    %v477 = vcombine.high %v219, %v219
    %v479 = vunpack.c.l.s4 1966171168
    %v480 = vunpack.c.0.s8 %v479
    %v481 = vlaneseq
    %v482 = vshrl.u32 %v481, 7
    %v483 = vsub.s32 %v480, %v482
    %v484 = vrot.slane %v219, %v483
    %v486 = vunpack.c.l.s4 1966171168
    %v487 = vunpack.c.0.s8 %v486
    %v488 = vlaneseq
    %v489 = vshrl.u32 %v488, 7
    %v490 = vsub.s32 %v487, %v489
    %v491 = vrot.slane %v477, %v490
    %v492 = vcombine.high %v484, %v484
    %v493 = vcombine.high %v491, %v491
    %v495 = vunpack.c.l.s4 1966171168
    %v496 = vunpack.c.0.s8 %v495
    %v497 = vlaneseq
    %v498 = vshrl.u32 %v497, 7
    %v499 = vsub.s32 %v496, %v498
    %v500 = vrot.slane %v484, %v499
    %v502 = vunpack.c.l.s4 1966171168
    %v503 = vunpack.c.0.s8 %v502
    %v504 = vlaneseq
    %v505 = vshrl.u32 %v504, 7
    %v506 = vsub.s32 %v503, %v505
    %v507 = vrot.slane %v491, %v506
    %v509 = vunpack.c.l.s4 1966171168
    %v510 = vunpack.c.0.s8 %v509
    %v511 = vlaneseq
    %v512 = vshrl.u32 %v511, 7
    %v513 = vsub.s32 %v510, %v512
    %v514 = vrot.slane %v492, %v513
    %v516 = vunpack.c.l.s4 1966171168
    %v517 = vunpack.c.0.s8 %v516
    %v518 = vlaneseq
    %v519 = vshrl.u32 %v518, 7
    %v520 = vsub.s32 %v517, %v519
    %v521 = vrot.slane %v493, %v520
    %v522 = vcombine.high %v500, %v500
    %v523 = vcombine.high %v507, %v507
    %v524 = vcombine.high %v514, %v514
    %v525 = vcombine.high %v521, %v521
    %v526 = vcombine.high %v220, %v220
    %v528 = vunpack.c.l.s4 1966171168
    %v529 = vunpack.c.0.s8 %v528
    %v530 = vlaneseq
    %v531 = vshrl.u32 %v530, 7
    %v532 = vsub.s32 %v529, %v531
    %v533 = vrot.slane %v220, %v532
    %v535 = vunpack.c.l.s4 1966171168
    %v536 = vunpack.c.0.s8 %v535
    %v537 = vlaneseq
    %v538 = vshrl.u32 %v537, 7
    %v539 = vsub.s32 %v536, %v538
    %v540 = vrot.slane %v526, %v539
    %v541 = vcombine.high %v533, %v533
    %v542 = vcombine.high %v540, %v540
    %v544 = vunpack.c.l.s4 1966171168
    %v545 = vunpack.c.0.s8 %v544
    %v546 = vlaneseq
    %v547 = vshrl.u32 %v546, 7
    %v548 = vsub.s32 %v545, %v547
    %v549 = vrot.slane %v533, %v548
    %v551 = vunpack.c.l.s4 1966171168
    %v552 = vunpack.c.0.s8 %v551
    %v553 = vlaneseq
    %v554 = vshrl.u32 %v553, 7
    %v555 = vsub.s32 %v552, %v554
    %v556 = vrot.slane %v540, %v555
    %v558 = vunpack.c.l.s4 1966171168
    %v559 = vunpack.c.0.s8 %v558
    %v560 = vlaneseq
    %v561 = vshrl.u32 %v560, 7
    %v562 = vsub.s32 %v559, %v561
    %v563 = vrot.slane %v541, %v562
    %v565 = vunpack.c.l.s4 1966171168
    %v566 = vunpack.c.0.s8 %v565
    %v567 = vlaneseq
    %v568 = vshrl.u32 %v567, 7
    %v569 = vsub.s32 %v566, %v568
    %v570 = vrot.slane %v542, %v569
    %v571 = vcombine.high %v549, %v549
    %v572 = vcombine.high %v556, %v556
    %v573 = vcombine.high %v563, %v563
    %v574 = vcombine.high %v570, %v570
    %v575 = vcombine.high %v221, %v221
    %v577 = vunpack.c.l.s4 1966171168
    %v578 = vunpack.c.0.s8 %v577
    %v579 = vlaneseq
    %v580 = vshrl.u32 %v579, 7
    %v581 = vsub.s32 %v578, %v580
    %v582 = vrot.slane %v221, %v581
    %v584 = vunpack.c.l.s4 1966171168
    %v585 = vunpack.c.0.s8 %v584
    %v586 = vlaneseq
    %v587 = vshrl.u32 %v586, 7
    %v588 = vsub.s32 %v585, %v587
    %v589 = vrot.slane %v575, %v588
    %v590 = vcombine.high %v582, %v582
    %v591 = vcombine.high %v589, %v589
    %v593 = vunpack.c.l.s4 1966171168
    %v594 = vunpack.c.0.s8 %v593
    %v595 = vlaneseq
    %v596 = vshrl.u32 %v595, 7
    %v597 = vsub.s32 %v594, %v596
    %v598 = vrot.slane %v582, %v597
    %v600 = vunpack.c.l.s4 1966171168
    %v601 = vunpack.c.0.s8 %v600
    %v602 = vlaneseq
    %v603 = vshrl.u32 %v602, 7
    %v604 = vsub.s32 %v601, %v603
    %v605 = vrot.slane %v589, %v604
    %v607 = vunpack.c.l.s4 1966171168
    %v608 = vunpack.c.0.s8 %v607
    %v609 = vlaneseq
    %v610 = vshrl.u32 %v609, 7
    %v611 = vsub.s32 %v608, %v610
    %v612 = vrot.slane %v590, %v611
    %v614 = vunpack.c.l.s4 1966171168
    %v615 = vunpack.c.0.s8 %v614
    %v616 = vlaneseq
    %v617 = vshrl.u32 %v616, 7
    %v618 = vsub.s32 %v615, %v617
    %v619 = vrot.slane %v591, %v618
    %v620 = vcombine.high %v598, %v598
    %v621 = vcombine.high %v605, %v605
    %v622 = vcombine.high %v612, %v612
    %v623 = vcombine.high %v619, %v619
    %v625 = vunpack.c.l.s4 1966171168
    %v626 = vunpack.c.0.s8 %v625
    %v627 = vlaneseq
    %v628 = vshrl.u32 %v627, 7
    %v629 = vsub.s32 %v626, %v628
    %v630 = vrot.slane %v222, %v629
    %v631 = vcombine.high %v630, %v630
    %v633 = vunpack.c.l.s4 1966171168
    %v634 = vunpack.c.0.s8 %v633
    %v635 = vlaneseq
    %v636 = vshrl.u32 %v635, 7
    %v637 = vsub.s32 %v634, %v636
    %v638 = vrot.slane %v630, %v637
    %v640 = vunpack.c.l.s4 1966171168
    %v641 = vunpack.c.0.s8 %v640
    %v642 = vlaneseq
    %v643 = vshrl.u32 %v642, 7
    %v644 = vsub.s32 %v641, %v643
    %v645 = vrot.slane %v631, %v644
    %v646 = vcombine.high %v638, %v638
    %v647 = vcombine.high %v645, %v645
    %v648 = vcombine.low %v255, %v269
    %v649 = vcombine.low %v277, %v279
    %v650 = vcombine.low %v262, %v276
    %v651 = vcombine.low %v278, %v280
    %v653 = vunpack.c.l.s4 1966171168
    %v654 = vunpack.c.0.s8 %v653
    %v655 = vlaneseq
    %v656 = vshrl.u32 %v655, 7
    %v657 = vsub.s32 %v654, %v656
    %v658 = vrot.slane %v648, %v657
    %v660 = vunpack.c.l.s4 1966171168
    %v661 = vunpack.c.0.s8 %v660
    %v662 = vlaneseq
    %v663 = vshrl.u32 %v662, 7
    %v664 = vsub.s32 %v661, %v663
    %v665 = vrot.slane %v649, %v664
    %v667 = vunpack.c.l.s4 1966171168
    %v668 = vunpack.c.0.s8 %v667
    %v669 = vlaneseq
    %v670 = vshrl.u32 %v669, 7
    %v671 = vsub.s32 %v668, %v670
    %v672 = vrot.slane %v650, %v671
    %v674 = vunpack.c.l.s4 1966171168
    %v675 = vunpack.c.0.s8 %v674
    %v676 = vlaneseq
    %v677 = vshrl.u32 %v676, 7
    %v678 = vsub.s32 %v675, %v677
    %v679 = vrot.slane %v651, %v678
    %v680 = vcombine.low %v658, %v665
    %v681 = vcombine.low %v672, %v679
    %v683 = vunpack.c.l.s4 1966171168
    %v684 = vunpack.c.0.s8 %v683
    %v685 = vlaneseq
    %v686 = vshrl.u32 %v685, 7
    %v687 = vsub.s32 %v684, %v686
    %v688 = vrot.slane %v680, %v687
    %v690 = vunpack.c.l.s4 1966171168
    %v691 = vunpack.c.0.s8 %v690
    %v692 = vlaneseq
    %v693 = vshrl.u32 %v692, 7
    %v694 = vsub.s32 %v691, %v693
    %v695 = vrot.slane %v681, %v694
    %v696 = vcombine.low %v688, %v695
    %v697 = vcombine.low %v304, %v318
    %v698 = vcombine.low %v326, %v328
    %v699 = vcombine.low %v311, %v325
    %v700 = vcombine.low %v327, %v329
    %v702 = vunpack.c.l.s4 1966171168
    %v703 = vunpack.c.0.s8 %v702
    %v704 = vlaneseq
    %v705 = vshrl.u32 %v704, 7
    %v706 = vsub.s32 %v703, %v705
    %v707 = vrot.slane %v697, %v706
    %v709 = vunpack.c.l.s4 1966171168
    %v710 = vunpack.c.0.s8 %v709
    %v711 = vlaneseq
    %v712 = vshrl.u32 %v711, 7
    %v713 = vsub.s32 %v710, %v712
    %v714 = vrot.slane %v698, %v713
    %v716 = vunpack.c.l.s4 1966171168
    %v717 = vunpack.c.0.s8 %v716
    %v718 = vlaneseq
    %v719 = vshrl.u32 %v718, 7
    %v720 = vsub.s32 %v717, %v719
    %v721 = vrot.slane %v699, %v720
    %v723 = vunpack.c.l.s4 1966171168
    %v724 = vunpack.c.0.s8 %v723
    %v725 = vlaneseq
    %v726 = vshrl.u32 %v725, 7
    %v727 = vsub.s32 %v724, %v726
    %v728 = vrot.slane %v700, %v727
    %v729 = vcombine.low %v707, %v714
    %v730 = vcombine.low %v721, %v728
    %v732 = vunpack.c.l.s4 1966171168
    %v733 = vunpack.c.0.s8 %v732
    %v734 = vlaneseq
    %v735 = vshrl.u32 %v734, 7
    %v736 = vsub.s32 %v733, %v735
    %v737 = vrot.slane %v729, %v736
    %v739 = vunpack.c.l.s4 1966171168
    %v740 = vunpack.c.0.s8 %v739
    %v741 = vlaneseq
    %v742 = vshrl.u32 %v741, 7
    %v743 = vsub.s32 %v740, %v742
    %v744 = vrot.slane %v730, %v743
    %v745 = vcombine.low %v737, %v744
    %v747 = vunpack.c.l.s4 1966171168
    %v748 = vunpack.c.0.s8 %v747
    %v749 = vlaneseq
    %v750 = vshrl.u32 %v749, 7
    %v751 = vsub.s32 %v748, %v750
    %v752 = vrot.slane %v353, %v751
    %v754 = vunpack.c.l.s4 1966171168
    %v755 = vunpack.c.0.s8 %v754
    %v756 = vlaneseq
    %v757 = vshrl.u32 %v756, 7
    %v758 = vsub.s32 %v755, %v757
    %v759 = vrot.slane %v752, %v758
    %v760 = vcombine.low %v367, %v375
    %v761 = vcombine.low %v377, %v360
    %v762 = vcombine.low %v374, %v376
    %v763 = vcombine.low %v378, %v402
    %v765 = vunpack.c.l.s4 1966171168
    %v766 = vunpack.c.0.s8 %v765
    %v767 = vlaneseq
    %v768 = vshrl.u32 %v767, 7
    %v769 = vsub.s32 %v766, %v768
    %v770 = vrot.slane %v760, %v769
    %v772 = vunpack.c.l.s4 1966171168
    %v773 = vunpack.c.0.s8 %v772
    %v774 = vlaneseq
    %v775 = vshrl.u32 %v774, 7
    %v776 = vsub.s32 %v773, %v775
    %v777 = vrot.slane %v761, %v776
    %v779 = vunpack.c.l.s4 1966171168
    %v780 = vunpack.c.0.s8 %v779
    %v781 = vlaneseq
    %v782 = vshrl.u32 %v781, 7
    %v783 = vsub.s32 %v780, %v782
    %v784 = vrot.slane %v762, %v783
    %v786 = vunpack.c.l.s4 1966171168
    %v787 = vunpack.c.0.s8 %v786
    %v788 = vlaneseq
    %v789 = vshrl.u32 %v788, 7
    %v790 = vsub.s32 %v787, %v789
    %v791 = vrot.slane %v763, %v790
    %v792 = vcombine.low %v770, %v777
    %v793 = vcombine.low %v784, %v791
    %v795 = vunpack.c.l.s4 1966171168
    %v796 = vunpack.c.0.s8 %v795
    %v797 = vlaneseq
    %v798 = vshrl.u32 %v797, 7
    %v799 = vsub.s32 %v796, %v798
    %v800 = vrot.slane %v792, %v799
    %v802 = vunpack.c.l.s4 1966171168
    %v803 = vunpack.c.0.s8 %v802
    %v804 = vlaneseq
    %v805 = vshrl.u32 %v804, 7
    %v806 = vsub.s32 %v803, %v805
    %v807 = vrot.slane %v793, %v806
    %v808 = vcombine.low %v800, %v807
    %v809 = vcombine.low %v416, %v424
    %v810 = vcombine.low %v426, %v409
    %v811 = vcombine.low %v423, %v425
    %v812 = vcombine.low %v427, %v451
    %v814 = vunpack.c.l.s4 1966171168
    %v815 = vunpack.c.0.s8 %v814
    %v816 = vlaneseq
    %v817 = vshrl.u32 %v816, 7
    %v818 = vsub.s32 %v815, %v817
    %v819 = vrot.slane %v809, %v818
    %v821 = vunpack.c.l.s4 1966171168
    %v822 = vunpack.c.0.s8 %v821
    %v823 = vlaneseq
    %v824 = vshrl.u32 %v823, 7
    %v825 = vsub.s32 %v822, %v824
    %v826 = vrot.slane %v810, %v825
    %v828 = vunpack.c.l.s4 1966171168
    %v829 = vunpack.c.0.s8 %v828
    %v830 = vlaneseq
    %v831 = vshrl.u32 %v830, 7
    %v832 = vsub.s32 %v829, %v831
    %v833 = vrot.slane %v811, %v832
    %v835 = vunpack.c.l.s4 1966171168
    %v836 = vunpack.c.0.s8 %v835
    %v837 = vlaneseq
    %v838 = vshrl.u32 %v837, 7
    %v839 = vsub.s32 %v836, %v838
    %v840 = vrot.slane %v812, %v839
    %v841 = vcombine.low %v819, %v826
    %v842 = vcombine.low %v833, %v840
    %v844 = vunpack.c.l.s4 1966171168
    %v845 = vunpack.c.0.s8 %v844
    %v846 = vlaneseq
    %v847 = vshrl.u32 %v846, 7
    %v848 = vsub.s32 %v845, %v847
    %v849 = vrot.slane %v841, %v848
    %v851 = vunpack.c.l.s4 1966171168
    %v852 = vunpack.c.0.s8 %v851
    %v853 = vlaneseq
    %v854 = vshrl.u32 %v853, 7
    %v855 = vsub.s32 %v852, %v854
    %v856 = vrot.slane %v842, %v855
    %v857 = vcombine.low %v849, %v856
    %v859 = vunpack.c.l.s4 1966171168
    %v860 = vunpack.c.0.s8 %v859
    %v861 = vlaneseq
    %v862 = vshrl.u32 %v861, 7
    %v863 = vsub.s32 %v860, %v862
    %v864 = vrot.slane %v465, %v863
    %v866 = vunpack.c.l.s4 1966171168
    %v867 = vunpack.c.0.s8 %v866
    %v868 = vlaneseq
    %v869 = vshrl.u32 %v868, 7
    %v870 = vsub.s32 %v867, %v869
    %v871 = vrot.slane %v864, %v870
    %v872 = vcombine.low %v473, %v475
    %v873 = vcombine.low %v458, %v472
    %v874 = vcombine.low %v474, %v476
    %v875 = vcombine.low %v500, %v514
    %v877 = vunpack.c.l.s4 1966171168
    %v878 = vunpack.c.0.s8 %v877
    %v879 = vlaneseq
    %v880 = vshrl.u32 %v879, 7
    %v881 = vsub.s32 %v878, %v880
    %v882 = vrot.slane %v872, %v881
    %v884 = vunpack.c.l.s4 1966171168
    %v885 = vunpack.c.0.s8 %v884
    %v886 = vlaneseq
    %v887 = vshrl.u32 %v886, 7
    %v888 = vsub.s32 %v885, %v887
    %v889 = vrot.slane %v873, %v888
    %v891 = vunpack.c.l.s4 1966171168
    %v892 = vunpack.c.0.s8 %v891
    %v893 = vlaneseq
    %v894 = vshrl.u32 %v893, 7
    %v895 = vsub.s32 %v892, %v894
    %v896 = vrot.slane %v874, %v895
    %v898 = vunpack.c.l.s4 1966171168
    %v899 = vunpack.c.0.s8 %v898
    %v900 = vlaneseq
    %v901 = vshrl.u32 %v900, 7
    %v902 = vsub.s32 %v899, %v901
    %v903 = vrot.slane %v875, %v902
    %v904 = vcombine.low %v882, %v889
    %v905 = vcombine.low %v896, %v903
    %v907 = vunpack.c.l.s4 1966171168
    %v908 = vunpack.c.0.s8 %v907
    %v909 = vlaneseq
    %v910 = vshrl.u32 %v909, 7
    %v911 = vsub.s32 %v908, %v910
    %v912 = vrot.slane %v904, %v911
    %v914 = vunpack.c.l.s4 1966171168
    %v915 = vunpack.c.0.s8 %v914
    %v916 = vlaneseq
    %v917 = vshrl.u32 %v916, 7
    %v918 = vsub.s32 %v915, %v917
    %v919 = vrot.slane %v905, %v918
    %v920 = vcombine.low %v912, %v919
    %v921 = vcombine.low %v522, %v524
    %v922 = vcombine.low %v507, %v521
    %v923 = vcombine.low %v523, %v525
    %v924 = vcombine.low %v549, %v563
    %v926 = vunpack.c.l.s4 1966171168
    %v927 = vunpack.c.0.s8 %v926
    %v928 = vlaneseq
    %v929 = vshrl.u32 %v928, 7
    %v930 = vsub.s32 %v927, %v929
    %v931 = vrot.slane %v921, %v930
    %v933 = vunpack.c.l.s4 1966171168
    %v934 = vunpack.c.0.s8 %v933
    %v935 = vlaneseq
    %v936 = vshrl.u32 %v935, 7
    %v937 = vsub.s32 %v934, %v936
    %v938 = vrot.slane %v922, %v937
    %v940 = vunpack.c.l.s4 1966171168
    %v941 = vunpack.c.0.s8 %v940
    %v942 = vlaneseq
    %v943 = vshrl.u32 %v942, 7
    %v944 = vsub.s32 %v941, %v943
    %v945 = vrot.slane %v923, %v944
    %v947 = vunpack.c.l.s4 1966171168
    %v948 = vunpack.c.0.s8 %v947
    %v949 = vlaneseq
    %v950 = vshrl.u32 %v949, 7
    %v951 = vsub.s32 %v948, %v950
    %v952 = vrot.slane %v924, %v951
    %v953 = vcombine.low %v931, %v938
    %v954 = vcombine.low %v945, %v952
    %v956 = vunpack.c.l.s4 1966171168
    %v957 = vunpack.c.0.s8 %v956
    %v958 = vlaneseq
    %v959 = vshrl.u32 %v958, 7
    %v960 = vsub.s32 %v957, %v959
    %v961 = vrot.slane %v953, %v960
    %v963 = vunpack.c.l.s4 1966171168
    %v964 = vunpack.c.0.s8 %v963
    %v965 = vlaneseq
    %v966 = vshrl.u32 %v965, 7
    %v967 = vsub.s32 %v964, %v966
    %v968 = vrot.slane %v954, %v967
    %v969 = vcombine.low %v961, %v968
    %v971 = vunpack.c.l.s4 1966171168
    %v972 = vunpack.c.0.s8 %v971
    %v973 = vlaneseq
    %v974 = vshrl.u32 %v973, 7
    %v975 = vsub.s32 %v972, %v974
    %v976 = vrot.slane %v571, %v975
    %v978 = vunpack.c.l.s4 1966171168
    %v979 = vunpack.c.0.s8 %v978
    %v980 = vlaneseq
    %v981 = vshrl.u32 %v980, 7
    %v982 = vsub.s32 %v979, %v981
    %v983 = vrot.slane %v976, %v982
    %v984 = vcombine.low %v573, %v556
    %v985 = vcombine.low %v570, %v572
    %v986 = vcombine.low %v574, %v598
    %v987 = vcombine.low %v612, %v620
    %v989 = vunpack.c.l.s4 1966171168
    %v990 = vunpack.c.0.s8 %v989
    %v991 = vlaneseq
    %v992 = vshrl.u32 %v991, 7
    %v993 = vsub.s32 %v990, %v992
    %v994 = vrot.slane %v984, %v993
    %v996 = vunpack.c.l.s4 1966171168
    %v997 = vunpack.c.0.s8 %v996
    %v998 = vlaneseq
    %v999 = vshrl.u32 %v998, 7
    %v1000 = vsub.s32 %v997, %v999
    %v1001 = vrot.slane %v985, %v1000
    %v1003 = vunpack.c.l.s4 1966171168
    %v1004 = vunpack.c.0.s8 %v1003
    %v1005 = vlaneseq
    %v1006 = vshrl.u32 %v1005, 7
    %v1007 = vsub.s32 %v1004, %v1006
    %v1008 = vrot.slane %v986, %v1007
    %v1010 = vunpack.c.l.s4 1966171168
    %v1011 = vunpack.c.0.s8 %v1010
    %v1012 = vlaneseq
    %v1013 = vshrl.u32 %v1012, 7
    %v1014 = vsub.s32 %v1011, %v1013
    %v1015 = vrot.slane %v987, %v1014
    %v1016 = vcombine.low %v994, %v1001
    %v1017 = vcombine.low %v1008, %v1015
    %v1019 = vunpack.c.l.s4 1966171168
    %v1020 = vunpack.c.0.s8 %v1019
    %v1021 = vlaneseq
    %v1022 = vshrl.u32 %v1021, 7
    %v1023 = vsub.s32 %v1020, %v1022
    %v1024 = vrot.slane %v1016, %v1023
    %v1026 = vunpack.c.l.s4 1966171168
    %v1027 = vunpack.c.0.s8 %v1026
    %v1028 = vlaneseq
    %v1029 = vshrl.u32 %v1028, 7
    %v1030 = vsub.s32 %v1027, %v1029
    %v1031 = vrot.slane %v1017, %v1030
    %v1032 = vcombine.low %v1024, %v1031
    %v1033 = vcombine.low %v622, %v605
    %v1034 = vcombine.low %v619, %v621
    %v1035 = vcombine.low %v623, %v638
    %v1036 = vcombine.low %v645, %v646
    %v1038 = vunpack.c.l.s4 1966171168
    %v1039 = vunpack.c.0.s8 %v1038
    %v1040 = vlaneseq
    %v1041 = vshrl.u32 %v1040, 7
    %v1042 = vsub.s32 %v1039, %v1041
    %v1043 = vrot.slane %v1033, %v1042
    %v1045 = vunpack.c.l.s4 1966171168
    %v1046 = vunpack.c.0.s8 %v1045
    %v1047 = vlaneseq
    %v1048 = vshrl.u32 %v1047, 7
    %v1049 = vsub.s32 %v1046, %v1048
    %v1050 = vrot.slane %v1034, %v1049
    %v1052 = vunpack.c.l.s4 1966171168
    %v1053 = vunpack.c.0.s8 %v1052
    %v1054 = vlaneseq
    %v1055 = vshrl.u32 %v1054, 7
    %v1056 = vsub.s32 %v1053, %v1055
    %v1057 = vrot.slane %v1035, %v1056
    %v1059 = vunpack.c.l.s4 1966171168
    %v1060 = vunpack.c.0.s8 %v1059
    %v1061 = vlaneseq
    %v1062 = vshrl.u32 %v1061, 7
    %v1063 = vsub.s32 %v1060, %v1062
    %v1064 = vrot.slane %v1036, %v1063
    %v1065 = vcombine.low %v1043, %v1050
    %v1066 = vcombine.low %v1057, %v1064
    %v1068 = vunpack.c.l.s4 1966171168
    %v1069 = vunpack.c.0.s8 %v1068
    %v1070 = vlaneseq
    %v1071 = vshrl.u32 %v1070, 7
    %v1072 = vsub.s32 %v1069, %v1071
    %v1073 = vrot.slane %v1065, %v1072
    %v1075 = vunpack.c.l.s4 1966171168
    %v1076 = vunpack.c.0.s8 %v1075
    %v1077 = vlaneseq
    %v1078 = vshrl.u32 %v1077, 7
    %v1079 = vsub.s32 %v1076, %v1078
    %v1080 = vrot.slane %v1066, %v1079
    %v1081 = vcombine.low %v1073, %v1080
    %v1083 = vunpack.c.l.s4 1966171168
    %v1084 = vunpack.c.0.s8 %v1083
    %v1085 = vlaneseq
    %v1086 = vshrl.u32 %v1085, 7
    %v1087 = vsub.s32 %v1084, %v1086
    %v1088 = vrot.slane %v647, %v1087
    %v1090 = vunpack.c.l.s4 1966171168
    %v1091 = vunpack.c.0.s8 %v1090
    %v1092 = vlaneseq
    %v1093 = vshrl.u32 %v1092, 7
    %v1094 = vsub.s32 %v1091, %v1093
    %v1095 = vrot.slane %v1088, %v1094
    %v1108 = vmax.f32 %v696, %v745
    %vm1109 = vcmask 1040384
    %v1110 = vsel %vm1109, %v759, -inf
    %v1111 = vmax.f32 %v1108, %v1110
    %v1112 = vrot.slane %v1111, 4
    %v1113 = vmax.f32 %v1111, %v1112
    %v1114 = vrot.slane %v1113, 2
    %v1115 = vmax.f32 %v1113, %v1114
    %v1116 = vrot.slane %v1115, 1
    %v1117 = vmax.f32 %v1115, %v1116
    %v1118 = vmax.f32 %v808, %v857
    %v1119 = vsel %vm1109, %v871, -inf
    %v1120 = vmax.f32 %v1118, %v1119
    %v1121 = vrot.slane %v1120, 4
    %v1122 = vmax.f32 %v1120, %v1121
    %v1123 = vrot.slane %v1122, 2
    %v1124 = vmax.f32 %v1122, %v1123
    %v1125 = vrot.slane %v1124, 1
    %v1126 = vmax.f32 %v1124, %v1125
    %v1127 = vmax.f32 %v920, %v969
    %v1128 = vsel %vm1109, %v983, -inf
    %v1129 = vmax.f32 %v1127, %v1128
    %v1130 = vrot.slane %v1129, 4
    %v1131 = vmax.f32 %v1129, %v1130
    %v1132 = vrot.slane %v1131, 2
    %v1133 = vmax.f32 %v1131, %v1132
    %v1134 = vrot.slane %v1133, 1
    %v1135 = vmax.f32 %v1133, %v1134
    %v1136 = vmax.f32 %v1032, %v1081
    %v1137 = vsel %vm1109, %v1095, -inf
    %v1138 = vmax.f32 %v1136, %v1137
    %v1139 = vrot.slane %v1138, 4
    %v1140 = vmax.f32 %v1138, %v1139
    %v1141 = vrot.slane %v1140, 2
    %v1142 = vmax.f32 %v1140, %v1141
    %v1143 = vrot.slane %v1142, 1
    %v1144 = vmax.f32 %v1142, %v1143
    %vm1149 = vcmask 1041409
    %v1150 = vsel %vm1149, %v1126, %v1117
    %vm1151 = vcmask 1042434
    %v1152 = vsel %vm1151, %v1135, %v1150
    %vm1153 = vcmask 1043459
    %v1154 = vsel %vm1153, %v1144, %v1152
    %1156 = vst [vmem:[#allocation2] sm:$0xf] %v1154
    // Predicated region
    $region14: #{cnn_forward.1} parent=1 // pred_check
      _
    $region15: #{cnn_forward.1} parent=1 // pred_check_branch
      %1158 = sbr.rel (0) target = $region17
    $region16: #{cnn_forward.1} parent=1 // pred_region
      %s1160 = ssub.s32 64, 64
      %1161 = vsyncadd [#allocation3], %s1160
      %s1163 = sshll.u32 [#allocation2], 4
      %s1164 = int_to_ptr.vmem [resolvable:$true] %s1163
      %1166 = dma.vmem_to_hbm [thread:$0]  %s1164, 64, %s3, [#allocation3]
    $region17: #{cnn_forward.1} parent=1 // pred_fallthru
      _
    // Predicated region
    $region18: #{cnn_forward.1} parent=1 // pred_check
      _
    $region19: #{cnn_forward.1} parent=1 // pred_check_branch
      %1168 = sbr.rel (0) target = $region21
    $region20: #{cnn_forward.1} parent=1 // pred_region
      %1169 = dma.done [#allocation3], 64
    $region21: #{cnn_forward.1} parent=1 // pred_fallthru
      _
    %1170 = vsyncpa [#allocation3], 1

</llo_original>
